<compile_context>
chip_gen: v7x
topology: tpu7x:2x2x1
jax: 0.10.0
libtpu: 0.0.40
codegen_flags: <defaults>
</compile_context>

<pallas_src>
import math

import jax
import jax.numpy as jnp
from jax import lax
from jax.experimental import pallas as pl
from jax.experimental.pallas import tpu as pltpu

DEFAULT_SIGMA_TO_BIN_RATIO = 2.0


# ------------------------------- tiling helpers ------------------------------


def _round_up(x, m):
    return ((x + m - 1) // m) * m


def _cdiv(a, b):
    return (a + b - 1) // b


def _sublane_pack(itemsize):
    # rows per packed sublane group: f32 -> 8, bf16 -> 16, int8/fp8 -> 32
    return 8 * max(1, 4 // max(1, itemsize))


def _pick_tiles(batch, num_bins, logits_itemsize):
    """Balanced batch tiles whose true VMEM footprint (double-buffered I/O blocks
    plus lane-padded f32 in-kernel temporaries) stays well under v7x's 64 MiB/TC."""
    pack = _sublane_pack(logits_itemsize)
    io_lanes = _round_up(num_bins, 128)          # logits block lane padding
    tmp_lanes = _round_up(num_bins + 1, 128)     # cdf / bin_probs / f32 logits / exp
    per_row = (
        2 * io_lanes * logits_itemsize           # logits block, double buffered
        + 2 * 128 * 4                            # (tb,1) target block, lane padded
        + 6 * tmp_lanes * 4                      # live f32 temporaries in-kernel
    )
    budget = 24 * 1024 * 1024                    # ~half of the 48 MiB scoped limit
    tb_max = max(pack, min(4096, budget // per_row))
    tb_max = (tb_max // pack) * pack

    num_tiles = _cdiv(batch, tb_max)
    if num_tiles == 1 and batch >= 1024:
        num_tiles = 2                            # give both v7x TensorCores a step
    tb = _round_up(_cdiv(batch, num_tiles), pack)
    num_tiles = _cdiv(batch, tb)
    return tb, num_tiles


_COMPILER_PARAMS = pltpu.CompilerParams(
    dimension_semantics=("parallel",),           # shard grid steps across TCs (v7x)
    vmem_limit_bytes=48 * 1024 * 1024,           # headroom under v7x's 64 MiB VMEM
)


# ------------------------------- Pallas kernels -------------------------------


def _loss_rows(logits_ref, target_ref, support_scaled_ref, inv_c, eps):
    """Per-row HL-Gauss soft-target cross entropy as a (tb, 1) f32 column."""
    t_scaled = target_ref[...] * inv_c                        # (tb, 1)

    # One erf per shared edge (halves erf work vs separate left/right grids);
    # support is already pre-scaled by 1/(sigma*sqrt(2)) on the host.
    cdf = lax.erf(support_scaled_ref[...] - t_scaled)         # (tb, nb+1)
    z = cdf[:, -1:] - cdf[:, :1]                              # (tb, 1)
    bin_probs = cdf[:, 1:] - cdf[:, :-1]                      # (tb, nb)
    inv_z = pl.reciprocal(jnp.maximum(z, eps), approx=False)  # exact, keeps 2e-5 tol

    logits = logits_ref[...].astype(jnp.float32)              # cast in-register
    m = jnp.max(logits, axis=-1, keepdims=True)
    lse = m + jnp.log(jnp.sum(jnp.exp(logits - m), axis=-1, keepdims=True))
    sum_bl = jnp.sum(bin_probs * logits, axis=-1, keepdims=True)

    # CE = lse*sum(p) - sum(p*logits), p = bin_probs*inv_z and sum(bin_probs) == z,
    # so factor inv_z out: target_probs never materialized, one less reduction.
    return inv_z * (lse * z - sum_bl)                         # (tb, 1)


def _make_loss_sum_kernel(inv_c, eps, batch, tile_rows):
    """reduction in ('mean','sum'): one f32 partial sum per grid step (lane-dense
    output; padded rows are masked in-kernel so they never reach the sum)."""
    def kernel(logits_ref, target_ref, support_scaled_ref, out_ref):
        loss = _loss_rows(logits_ref, target_ref, support_scaled_ref, inv_c, eps)
        row = pl.program_id(0) * tile_rows + lax.broadcasted_iota(
            jnp.int32, (tile_rows, 1), 0)
        loss = jnp.where(row < batch, loss, 0.0)
        out_ref[...] = jnp.sum(loss, axis=0, keepdims=True)   # (1, 1)
    return kernel


def _make_loss_rows_kernel(inv_c, eps):
    """reduction='none': per-row loss values."""
    def kernel(logits_ref, target_ref, support_scaled_ref, out_ref):
        out_ref[...] = _loss_rows(
            logits_ref, target_ref, support_scaled_ref, inv_c, eps)
    return kernel


def _pred_kernel(logits_ref, w_ref, out_ref):
    """No-target path: transform_from_logits = sum(softmax(logits) * centers).
    Numerator and denominator are fused into one matmul against [centers | ones]
    on the otherwise idle MXU (exp on EUP still dominates)."""
    logits = logits_ref[...].astype(jnp.float32)               # (tb, nb)
    m = jnp.max(logits, axis=-1, keepdims=True)
    e = jnp.exp(logits - m)
    nd = jnp.dot(e, w_ref[...], preferred_element_type=jnp.float32)   # (tb, 2)
    out_ref[...] = nd[:, 0:1] * pl.reciprocal(nd[:, 1:2], approx=False)


# -------------------------------- module wrapper -------------------------------


class HLGaussLossFromSupportPallas:
    def __init__(self, support, sigma=None, sigma_to_bin_ratio=None,
                 eps=1e-10, clamp_to_range=False):
        support = jnp.asarray(support, dtype=jnp.float32)
        assert bool(jnp.all(support[1:] - support[:-1] > 0.0)), \
            "support must be increasing in value throughout"
        assert not (sigma is not None and sigma_to_bin_ratio is not None)

        mean_bin_size = float(jnp.mean(support[1:] - support[:-1]))
        sigma_to_bin_ratio = (DEFAULT_SIGMA_TO_BIN_RATIO
                              if sigma_to_bin_ratio is None else sigma_to_bin_ratio)
        sigma = float(sigma) if sigma is not None else sigma_to_bin_ratio * mean_bin_size
        assert sigma > 0.0

        self.eps = float(eps)
        self.sigma = sigma
        self.sigma_times_sqrt_two = math.sqrt(2.0) * sigma
        self.inv_c = 1.0 / self.sigma_times_sqrt_two
        self.num_bins = int(support.shape[0]) - 1
        self.min_value = float(support[0])
        self.max_value = float(support[-1])
        self.clamp_to_range = clamp_to_range

        self.support = support
        self.centers = (support[:-1] + support[1:]) / 2.0               # (NB,)
        # Host-side constant folds:
        #  * support pre-scaled by 1/(sigma*sqrt(2)) -> the kernel only rescales
        #    the (tb,1) target column instead of the (tb,nb+1) edge grid.
        #  * [centers | ones] lets the pred kernel fuse both reductions on the MXU.
        self.support_scaled_row = (support * self.inv_c).reshape(1, self.num_bins + 1)
        self.centers_ones = jnp.stack(
            [self.centers, jnp.ones_like(self.centers)], axis=1)        # (NB, 2)

    # --- forward ---
    def __call__(self, logits, target=None, reduction="mean"):
        if target is None:
            return self._transform_from_logits(logits)

        target = jnp.asarray(target, jnp.float32)
        if self.clamp_to_range:
            target = jnp.clip(target, self.min_value, self.max_value)

        # TODO(synk): the branch where logits.shape == target.shape (raw values ->
        # transform_to_logprobs) of the PyTorch module is not implemented here.
        assert logits.shape[-1] == self.num_bins
        assert logits.shape[:-1] == target.shape
        assert reduction in ("mean", "sum", "none")

        nb = self.num_bins
        lead_shape = target.shape
        logits2d = logits.reshape(-1, nb)          # keep caller dtype (no f32 HBM copy)
        B = logits2d.shape[0]
        target2d = target.reshape(B, 1)

        itemsize = jnp.dtype(logits2d.dtype).itemsize
        tb, num_tiles = _pick_tiles(B, nb, itemsize)
        b_pad = tb * num_tiles
        if b_pad != B:
            logits2d = jnp.pad(logits2d, ((0, b_pad - B), (0, 0)))
            target2d = jnp.pad(target2d, ((0, b_pad - B), (0, 0)))

        cost = pl.CostEstimate(
            flops=int(10 * b_pad * nb),
            transcendentals=int(b_pad * (2 * nb + 2)),      # erf over edges + exp
            bytes_accessed=int(logits2d.size * itemsize + 4 * b_pad + 4 * (nb + 1)),
        )
        in_specs = [
            pl.BlockSpec((tb, nb), lambda i: (i, 0)),
            pl.BlockSpec((tb, 1), lambda i: (i, 0)),
            pl.BlockSpec((1, nb + 1), lambda i: (0, 0)),
        ]

        if reduction in ("mean", "sum"):
            # In-kernel masked partial sums: each grid step writes a single f32, so
            # no 128x lane-padded per-row column travels through VMEM / HBM.
            partial = pl.pallas_call(
                _make_loss_sum_kernel(self.inv_c, self.eps, B, tb),
                out_shape=jax.ShapeDtypeStruct((num_tiles, 1), jnp.float32),
                grid=(num_tiles,),
                in_specs=in_specs,
                out_specs=pl.BlockSpec((1, 1), lambda i: (i, 0)),
                compiler_params=_COMPILER_PARAMS,
                cost_estimate=cost,
            )(logits2d, target2d, self.support_scaled_row)
            total = jnp.sum(partial)
            return total if reduction == "sum" else total * (1.0 / B)

        per_row = pl.pallas_call(
            _make_loss_rows_kernel(self.inv_c, self.eps),
            out_shape=jax.ShapeDtypeStruct((b_pad, 1), jnp.float32),
            grid=(num_tiles,),
            in_specs=in_specs,
            out_specs=pl.BlockSpec((tb, 1), lambda i: (i, 0)),
            compiler_params=_COMPILER_PARAMS,
            cost_estimate=cost,
        )(logits2d, target2d, self.support_scaled_row)
        return per_row[:B, 0].reshape(lead_shape)

    def _transform_from_logits(self, logits):
        assert logits.shape[-1] == self.num_bins
        nb = self.num_bins
        lead_shape = logits.shape[:-1]
        logits2d = logits.reshape(-1, nb)           # keep caller dtype
        B = logits2d.shape[0]

        itemsize = jnp.dtype(logits2d.dtype).itemsize
        tb, num_tiles = _pick_tiles(B, nb, itemsize)
        b_pad = tb * num_tiles
        if b_pad != B:
            logits2d = jnp.pad(logits2d, ((0, b_pad - B), (0, 0)))

        cost = pl.CostEstimate(
            flops=int(5 * b_pad * nb),
            transcendentals=int(b_pad * nb),
            bytes_accessed=int(logits2d.size * itemsize + 4 * b_pad + 8 * nb),
        )
        out = pl.pallas_call(
            _pred_kernel,
            out_shape=jax.ShapeDtypeStruct((b_pad, 1), jnp.float32),
            grid=(num_tiles,),
            in_specs=[
                pl.BlockSpec((tb, nb), lambda i: (i, 0)),
                pl.BlockSpec((nb, 2), lambda i: (0, 0)),
            ],
            out_specs=pl.BlockSpec((tb, 1), lambda i: (i, 0)),
            compiler_params=_COMPILER_PARAMS,
            cost_estimate=cost,
        )(logits2d, self.centers_ones)
        return out[:B, 0].reshape(lead_shape)


# ------------------------------- pure-JAX reference ----------------------------


def _reference_loss_rows(support, sigma, eps, logits, target):
    c = math.sqrt(2.0) * sigma
    cdf = jax.scipy.special.erf((support[None, :] - target[:, None]) / c)
    z = cdf[:, -1] - cdf[:, 0]
    bin_probs = cdf[:, 1:] - cdf[:, :-1]
    tp = bin_probs / jnp.maximum(z, eps)[:, None]
    logp = jax.nn.log_softmax(logits.astype(jnp.float32), axis=-1)
    return -jnp.sum(tp * logp, axis=-1)


def _reference_pred(support, logits):
    centers = (support[:-1] + support[1:]) / 2.0
    probs = jax.nn.softmax(logits.astype(jnp.float32), axis=-1)
    return jnp.sum(probs * centers[None, :], axis=-1)


# ------------------------------------- main ------------------------------------


if __name__ == "__main__":
    key = jax.random.PRNGKey(0)
    k1, k2 = jax.random.split(key)

    num_bins = 32
    lead = (2, 5)                      # 10 flattened rows -> exercises batch padding
    support = jnp.linspace(-2.0, 2.0, num_bins + 1)

    module = HLGaussLossFromSupportPallas(support)   # sigma = 2.0 * mean_bin_size

    logits = jax.random.normal(k1, lead + (num_bins,), dtype=jnp.float32)
    target = jax.random.uniform(k2, lead, dtype=jnp.float32, minval=-2.0, maxval=2.0)

    loss_mean = module(logits, target)                    # reduced (in-kernel sums)
    loss_none = module(logits, target, reduction="none")  # per-row path
    pred = module(logits)                                 # no-target path
    jax.block_until_ready((loss_mean, loss_none, pred))

    l2 = logits.reshape(-1, num_bins)
    t1 = target.reshape(-1)
    ref_rows = _reference_loss_rows(support, module.sigma, module.eps, l2, t1)
    ref_pred = _reference_pred(support, l2).reshape(lead)

    assert jnp.allclose(loss_mean, jnp.mean(ref_rows), atol=2e-5, rtol=2e-5), \
        (loss_mean, jnp.mean(ref_rows))
    assert jnp.allclose(loss_none, ref_rows.reshape(lead), atol=2e-5, rtol=2e-5)
    assert jnp.allclose(pred, ref_pred, atol=2e-5, rtol=2e-5)

    print("KERNEL_OK")
</pallas_src>

<mosaic_0001>
module attributes {stable_mosaic.version = 11 : i64} {
  func.func @kernel(%arg0: i32, %arg1: memref<16x32xf32, #tpu.memory_space<vmem>>, %arg2: memref<16x1xf32, #tpu.memory_space<vmem>>, %arg3: memref<1x33xf32, #tpu.memory_space<vmem>>, %arg4: memref<1x1xf32, #tpu.memory_space<vmem>>) attributes {dimension_semantics = [#tpu.dimension_semantics<parallel>], iteration_bounds = array<i64: 1>, scalar_prefetch = 0 : i64, scratch_operands = 0 : i64, tpu.core_type = #tpu.core_type<tc>, window_params = [{transform_indices = @transform_0, window_bounds = array<i64: 16, 32>}, {transform_indices = @transform_1, window_bounds = array<i64: 16, 1>}, {pipeline_mode = #tpu.pipeline_mode<synchronous>, transform_indices = @transform_2, window_bounds = array<i64: 1, 33>}, {transform_indices = @transform_3, window_bounds = array<i64: 1, 1>}]} {
    %c0 = arith.constant 0 : index
    %c0_0 = arith.constant 0 : index
    %0 = vector.load %arg2[%c0, %c0_0] : memref<16x1xf32, #tpu.memory_space<vmem>>, vector<16x1xf32>
    %cst = arith.constant 2.82842708 : f32
    %1 = vector.broadcast %cst : f32 to vector<16x1xf32>
    %2 = arith.mulf %0, %1 : vector<16x1xf32>
    %c0_1 = arith.constant 0 : index
    %c0_2 = arith.constant 0 : index
    %3 = vector.load %arg3[%c0_1, %c0_2] : memref<1x33xf32, #tpu.memory_space<vmem>>, vector<1x33xf32>
    %4 = vector.broadcast %3 : vector<1x33xf32> to vector<16x33xf32>
    %5 = vector.broadcast %2 : vector<16x1xf32> to vector<16x33xf32>
    %6 = arith.subf %4, %5 : vector<16x33xf32>
    %7 = math.erf %6 : vector<16x33xf32>
    %8 = vector.extract_strided_slice %7 {offsets = [0, 32], sizes = [16, 1], strides = [1, 1]} : vector<16x33xf32> to vector<16x1xf32>
    %9 = vector.extract_strided_slice %7 {offsets = [0, 0], sizes = [16, 1], strides = [1, 1]} : vector<16x33xf32> to vector<16x1xf32>
    %10 = arith.subf %8, %9 : vector<16x1xf32>
    %11 = vector.extract_strided_slice %7 {offsets = [0, 1], sizes = [16, 32], strides = [1, 1]} : vector<16x33xf32> to vector<16x32xf32>
    %12 = vector.extract_strided_slice %7 {offsets = [0, 0], sizes = [16, 32], strides = [1, 1]} : vector<16x33xf32> to vector<16x32xf32>
    %13 = arith.subf %11, %12 : vector<16x32xf32>
    %cst_3 = arith.constant 1.000000e-10 : f32
    %14 = vector.broadcast %cst_3 : f32 to vector<16x1xf32>
    %15 = arith.maximumf %10, %14 : vector<16x1xf32>
    %16 = tpu.reciprocal %15 : vector<16x1xf32> -> vector<16x1xf32>
    %c0_4 = arith.constant 0 : index
    %c0_5 = arith.constant 0 : index
    %17 = vector.load %arg1[%c0_4, %c0_5] : memref<16x32xf32, #tpu.memory_space<vmem>>, vector<16x32xf32>
    %cst_6 = arith.constant dense<0xFF800000> : vector<16xf32>
    %18 = vector.multi_reduction <maximumf>, %17, %cst_6 [1] : vector<16x32xf32> to vector<16xf32>
    %19 = vector.shape_cast %18 : vector<16xf32> to vector<16x1xf32>
    %20 = vector.broadcast %19 : vector<16x1xf32> to vector<16x32xf32>
    %21 = arith.subf %17, %20 : vector<16x32xf32>
    %22 = math.exp %21 : vector<16x32xf32>
    %cst_7 = arith.constant dense<0.000000e+00> : vector<16xf32>
    %23 = vector.multi_reduction <add>, %22, %cst_7 [1] : vector<16x32xf32> to vector<16xf32>
    %24 = vector.shape_cast %23 : vector<16xf32> to vector<16x1xf32>
    %25 = math.log %24 : vector<16x1xf32>
    %26 = arith.addf %19, %25 : vector<16x1xf32>
    %27 = arith.mulf %13, %17 : vector<16x32xf32>
    %cst_8 = arith.constant dense<0.000000e+00> : vector<16xf32>
    %28 = vector.multi_reduction <add>, %27, %cst_8 [1] : vector<16x32xf32> to vector<16xf32>
    %29 = vector.shape_cast %28 : vector<16xf32> to vector<16x1xf32>
    %30 = arith.mulf %26, %10 : vector<16x1xf32>
    %31 = arith.subf %30, %29 : vector<16x1xf32>
    %32 = arith.mulf %16, %31 : vector<16x1xf32>
    %c16_i32 = arith.constant 16 : i32
    %33 = arith.muli %arg0, %c16_i32 : i32
    %34 = tpu.iota {dimensions = array<i32: 0>} : vector<16x1xi32>
    %35 = vector.broadcast %33 : i32 to vector<16x1xi32>
    %36 = arith.addi %35, %34 : vector<16x1xi32>
    %c10_i32 = arith.constant 10 : i32
    %37 = vector.broadcast %c10_i32 : i32 to vector<16x1xi32>
    %38 = arith.cmpi slt, %36, %37 : vector<16x1xi32>
    %cst_9 = arith.constant 0.000000e+00 : f32
    %39 = vector.broadcast %cst_9 : f32 to vector<16x1xf32>
    %40 = arith.select %38, %32, %39 : vector<16x1xi1>, vector<16x1xf32>
    %cst_10 = arith.constant dense<0.000000e+00> : vector<1xf32>
    %41 = vector.multi_reduction <add>, %40, %cst_10 [0] : vector<16x1xf32> to vector<1xf32>
    %42 = vector.shape_cast %41 : vector<1xf32> to vector<1x1xf32>
    %c0_11 = arith.constant 0 : index
    %c0_12 = arith.constant 0 : index
    %43 = vector.load %arg4[%c0_11, %c0_12] : memref<1x1xf32, #tpu.memory_space<vmem>>, vector<1x1xf32>
    tpu.vector_store %arg4[%c0_11, %c0_12], %42 {strides = array<i32>} : memref<1x1xf32, #tpu.memory_space<vmem>>, vector<1x1xf32>,
    return
  }
  func.func @transform_0(%arg0: i32) -> (i32, i32) {
    %c0_i32 = arith.constant 0 : i32
    %c0_i32_0 = arith.constant 0 : i32
    return %arg0, %c0_i32 : i32, i32
  }
  func.func @transform_1(%arg0: i32) -> (i32, i32) {
    %c0_i32 = arith.constant 0 : i32
    %c0_i32_0 = arith.constant 0 : i32
    return %arg0, %c0_i32 : i32, i32
  }
  func.func @transform_2(%arg0: i32) -> (i32, i32) {
    %c0_i32 = arith.constant 0 : i32
    %c0_i32_0 = arith.constant 0 : i32
    %c0_i32_1 = arith.constant 0 : i32
    return %c0_i32, %c0_i32_0 : i32, i32
  }
  func.func @transform_3(%arg0: i32) -> (i32, i32) {
    %c0_i32 = arith.constant 0 : i32
    %c0_i32_0 = arith.constant 0 : i32
    return %arg0, %c0_i32 : i32, i32
  }
}

</mosaic_0001>

<llo_original>
// kernel: tpu_custom_call.1
$region0: #{tpu_custom_call.1}
  #allocation0 [shape = 'u32[]', space=smem, size = 0x4, offset = 0x4, fixed_abs, tag = 'smem constant byte address 0x4 - core index']
  #allocation1 [shape = 'u32[144,128]{1,0:T(1,128)}', space=vmem, size = 0x12000, scoped, tag = 'internal scratch']
  %s0 = inlined_call_operand.vmem [shape: f32[16,32], index: 0, kind: input, shape index: {}]
  %s1 = inlined_call_operand.vmem [shape: f32[16,1], index: 1, kind: input, shape index: {}]
  %s2 = inlined_call_operand.vmem [shape: f32[1,33], index: 2, kind: input, shape index: {}]
  %s3 = inlined_call_operand.hbm [shape: f32[1,1], index: 3, kind: output, shape index: {}]
  %s4 = sld [smem:[#allocation0]]
  $region22: #{tpu_custom_call.1} parent=0
    _
  %s6 = ssub.s32 1, %s4
  %s7 = scalar_select 0, %s6, %s4
  $region1: #{tpu_custom_call.1} parent=0
    #allocation2 [shape = 'u8[512]{0}', space=vmem, size = 0x400, scoped, tag = 'output window, operand 0, single buffered']
    #allocation3 [shape = 's32[1]{0}', space=sflag, size = 0x4, scoped, tag = 'scoped memory for tpu_custom_call.1']
    %8 = vsyncpa [#allocation3], 0
    // Predicated region
    $region2: #{tpu_custom_call.1} parent=1 // pred_check
      _
    $region3: #{tpu_custom_call.1} parent=1 // pred_check_branch
      %10 = sbr.rel (0) target = $region5
    $region4: #{tpu_custom_call.1} parent=1 // pred_region
      _
    $region5: #{tpu_custom_call.1} parent=1 // pred_fallthru
      _
    // Predicated region
    $region6: #{tpu_custom_call.1} parent=1 // pred_check
      _
    $region7: #{tpu_custom_call.1} parent=1 // pred_check_branch
      %12 = sbr.rel (0) target = $region9
    $region8: #{tpu_custom_call.1} parent=1 // pred_region
      _
    $region9: #{tpu_custom_call.1} parent=1 // pred_fallthru
      _
    // Predicated region
    $region10: #{tpu_custom_call.1} parent=1 // pred_check
      _
    $region11: #{tpu_custom_call.1} parent=1 // pred_check_branch
      %14 = sbr.rel (0) target = $region13
    $region12: #{tpu_custom_call.1} parent=1 // pred_region
      _
    $region13: #{tpu_custom_call.1} parent=1 // pred_fallthru
      _
    %v15 = vld [vmem:[%s1] sm:$0xff]
    %v16 = vld [vmem:[%s1 + $0x8] sm:$0xff]
    %v17 = vmul.f32 %v15, 2.828427
    %v18 = vmul.f32 %v16, 2.828427
    %v19 = vld [vmem:[%s2] sm:$0x1]
    %v21 = vlaneseq
    %v22 = vshrl.u32 %v21, 7
    %v23 = vsub.s32 0, %v22
    %v24 = vrot.slane %v19, %v23
    %27 = vset.pattern.permute.xlu0 0
    %28 = vperm.xlu0 %27, %v17
    %v29 = vpop.permute.xlu0 %28
    %32 = vset.pattern.permute.xlu0 0
    %33 = vperm.xlu0 %32, %v18
    %v34 = vpop.permute.xlu0 %33
    %v36 = vsub.f32 %v24, %v29
    %v37 = vsub.f32 %v24, %v34
    %v38 = verf.f32.pop %v36
    %v39 = verf.f32.pop %v37
    %42 = vrot.lane.b32.xlu0 %v38, 32
    %v43 = vpop.permute.xlu0 %42
    %44 = vrot.lane.b32.xlu0 %v39, 32
    %v45 = vpop.permute.xlu0 %44
    %v48 = vsub.f32 %v38, %v43
    %v49 = vsub.f32 %v39, %v45
    %50 = vrot.lane.b32.xlu0 %v38, 1
    %v51 = vpop.permute.xlu0 %50
    %52 = vrot.lane.b32.xlu0 %v39, 1
    %v53 = vpop.permute.xlu0 %52
    %v56 = vsub.f32 %v38, %v51
    %v57 = vsub.f32 %v39, %v53
    %v58 = vmax.f32 %v48, 1e-10
    %v59 = vmax.f32 %v49, 1e-10
    %v60 = vrcp.pop %v58
    %v61 = vrcp.pop %v59
    %v62 = vld [vmem:[%s0] sm:$0xff]
    %v63 = vld [vmem:[%s0 + $0x8] sm:$0xff]
    %vm64 = vcmask 261120
    %v65 = vsel %vm64, %v62, -inf
    %66 = vmax.xlane.f32.xlu0 %v65
    %v67 = vpop.xlane.xlu0 %66
    %v68 = vsel %vm64, %v63, -inf
    %69 = vmax.xlane.f32.xlu0 %v68
    %v70 = vpop.xlane.xlu0 %69
    %v71 = vsub.f32 %v62, %v67
    %v72 = vsub.f32 %v63, %v70
    %v73 = vmul.f32 %v71, 1.442695
    %v74 = vpow.pop %v73
    %v75 = vmul.f32 %v72, 1.442695
    %v76 = vpow.pop %v75
    %v77 = vsel %vm64, %v74, 0.0
    %78 = vadd.xlane.f32.xlu0 %v77
    %v79 = vpop.xlane.xlu0 %78
    %v80 = vsel %vm64, %v76, 0.0
    %81 = vadd.xlane.f32.xlu0 %v80
    %v82 = vpop.xlane.xlu0 %81
    %v83 = vlog2.pop %v79
    %v84 = vmul.f32 %v83, 0.6931472
    %v85 = vlog2.pop %v82
    %v86 = vmul.f32 %v85, 0.6931472
    %v87 = vadd.f32 %v67, %v84
    %v88 = vadd.f32 %v70, %v86
    %91 = vrot.lane.b32.xlu0 %v62, 1
    %v92 = vpop.permute.xlu0 %91
    %93 = vrot.lane.b32.xlu0 %v63, 1
    %v94 = vpop.permute.xlu0 %93
    %v97 = vmul.f32 %v56, %v92
    %v98 = vmul.f32 %v57, %v94
    %101 = vrot.lane.b32.xlu0 %v97, 127
    %v102 = vpop.permute.xlu0 %101
    %103 = vrot.lane.b32.xlu0 %v98, 127
    %v104 = vpop.permute.xlu0 %103
    %v107 = vsel %vm64, %v102, 0.0
    %108 = vadd.xlane.f32.xlu0 %v107
    %v109 = vpop.xlane.xlu0 %108
    %v110 = vsel %vm64, %v104, 0.0
    %111 = vadd.xlane.f32.xlu0 %v110
    %v112 = vpop.xlane.xlu0 %111
    %v113 = vmul.f32 %v87, %v48
    %v114 = vmul.f32 %v88, %v49
    %v115 = vsub.f32 %v113, %v109
    %v116 = vsub.f32 %v114, %v112
    %v117 = vmul.f32 %v60, %v115
    %v118 = vmul.f32 %v61, %v116
    %s119 = smul.u32 0, 16
    %v120 = vlaneseq
    %v121 = vshrl.u32 %v120, 7
    %v122 = vadd.s32 %v121, 8
    %v123 = vstv %s119
    %v124 = vadd.s32 %v123, %v121
    %v125 = vadd.s32 %v123, %v122
    %vm126 = vcmp.lt.s32.totalorder %v124, 10
    %vm127 = vcmp.lt.s32.totalorder %v125, 10
    %v128 = vsel %vm126, %v117, 0.0
    %v129 = vsel %vm127, %v118, 0.0
    %vm130 = vcmask 269568
    %v131 = vsel %vm130, %v128, 0.0
    %v132 = vsel %vm130, %v129, 0.0
    %v133 = vadd.f32 %v131, %v132
    %v134 = vrot.slane %v133, 4
    %v135 = vadd.f32 %v133, %v134
    %v136 = vrot.slane %v135, 2
    %v137 = vadd.f32 %v135, %v136
    %v138 = vrot.slane %v137, 1
    %v139 = vadd.f32 %v137, %v138
    %141 = vrot.lane.b32.xlu0 %v139, 96
    %v142 = vpop.permute.xlu0 %141
    %vm144 = vcmask 0
    %145 = vst.msk [vmem:[#allocation2] sm:$0x1] %vm144, %v142
    // Predicated region
    $region14: #{tpu_custom_call.1} parent=1 // pred_check
      _
    $region15: #{tpu_custom_call.1} parent=1 // pred_check_branch
      %147 = sbr.rel (0) target = $region17
    $region16: #{tpu_custom_call.1} parent=1 // pred_region
      %s149 = ssub.s32 16, 16
      %150 = vsyncadd [#allocation3], %s149
      %s152 = sshll.u32 [#allocation2], 4
      %s153 = int_to_ptr.vmem [resolvable:$true] %s152
      %155 = dma.vmem_to_hbm [thread:$0]  %s153, 16, %s3, [#allocation3]
    $region17: #{tpu_custom_call.1} parent=1 // pred_fallthru
      _
    // Predicated region
    $region18: #{tpu_custom_call.1} parent=1 // pred_check
      _
    $region19: #{tpu_custom_call.1} parent=1 // pred_check_branch
      %157 = sbr.rel (0) target = $region21
    $region20: #{tpu_custom_call.1} parent=1 // pred_region
      %158 = dma.done [#allocation3], 16
    $region21: #{tpu_custom_call.1} parent=1 // pred_fallthru
      _
    %159 = vsyncpa [#allocation3], 1

</llo_original>
